<compile_context>
chip_gen: v5e
topology: v5e:2x2
jax: 0.10.0
libtpu: 0.0.40
codegen_flags: <defaults>
</compile_context>

<pallas_src>
import functools
import math

import jax
import jax.numpy as jnp
import numpy as np
from jax import lax
from jax.experimental import pallas as pl
from jax.experimental.pallas import tpu as pltpu


# --------------------------------------------------------------------------- #
# Kernel
# --------------------------------------------------------------------------- #
def _scores_kernel(*refs, cross):
    """Fused multi-worker attention scores for one batch chunk.

    refs (VMEM blocks):
      a_ref            : (bc, kq, R)    query-side activations
      b_ref (if cross) : (bc, kv, R)    key-side activations (== a_ref for SA)
      wq_ref           : (R,  W*R)      fused Q weights, 1/sqrt(R) pre-folded
      wk_ref           : (W*R, R)       stacked K weights (rows = w*R + out_feat)
      e_ref            : (kv, W*kv)     one-hot expand: col key*W + w  <-  row key
      mask_ref         : (W*R, W*kv)    0/1 block-diag: row-worker == col-worker
      out_ref          : (bc, kq, W*kv) out[i, q, key*W + w] = Q_w[q].K_w[key]/sqrt(R)
    """
    if cross:
        a_ref, b_ref, wq_ref, wk_ref, e_ref, mask_ref, out_ref = refs
    else:
        a_ref, wq_ref, wk_ref, e_ref, mask_ref, out_ref = refs
        b_ref = a_ref

    bc, kq, r = a_ref.shape
    _, kv, _ = b_ref.shape

    a2 = a_ref[...].reshape(bc * kq, r)                       # (bc*kq, R)
    b2 = a2 if not cross else b_ref[...].reshape(bc * kv, r)  # (bc*kv, R)

    # Q side: one wide projection for the whole chunk (scale already folded in).
    q_all = jnp.dot(a2, wq_ref[...], preferred_element_type=jnp.float32)   # (bc*kq, W*R)

    # K side: contract the stacked (W*R, R) weights with the activations so the
    # projection comes out already transposed (features on sublanes); the score
    # matmul below is then a plain contraction over W*R with no worker-major
    # intermediate or permutation step.
    kt_all = lax.dot_general(wk_ref[...], b2, (((1,), (1,)), ((), ())),
                             preferred_element_type=jnp.float32)           # (W*R, bc*kv)

    e = e_ref[...]        # (kv, W*kv)
    mask = mask_ref[...]  # (W*R, W*kv)

    outs = []
    for i in range(bc):                                       # static, tiny loop
        q_i = q_all[i * kq:(i + 1) * kq, :]                   # (kq, W*R)  8-aligned sublane slice
        kt_i = kt_all[:, i * kv:(i + 1) * kv]                 # (W*R, kv)  whole array when bc == 1
        # Expand key columns W-fold (one-hot matmul) and zero the cross-worker
        # blocks; the single contraction-dim = W*R matmul then writes the final
        # interleaved (q, key*W + w) layout directly.
        k_int = jnp.dot(kt_i, e, preferred_element_type=jnp.float32) * mask   # (W*R, W*kv)
        outs.append(jnp.dot(q_i, k_int, preferred_element_type=jnp.float32))  # (kq, W*kv)

    out_ref[...] = jnp.stack(outs, axis=0).astype(out_ref.dtype)


# --------------------------------------------------------------------------- #
# Wrapper
# --------------------------------------------------------------------------- #
def _score_constants(num_workers, r, kv):
    """Host-side constants: one-hot expand (kv, W*kv) and block-diag mask (W*R, W*kv)."""
    col_worker = np.arange(num_workers * kv) % num_workers
    col_key = np.arange(num_workers * kv) // num_workers
    row_worker = np.arange(num_workers * r) // r
    expand = (np.arange(kv)[:, None] == col_key[None, :]).astype(np.float32)
    mask = (row_worker[:, None] == col_worker[None, :]).astype(np.float32)
    return jnp.asarray(expand), jnp.asarray(mask)


def fused_attn_scores(x, wq_fused, wk_stacked, y=None, *, num_chunks=None):
    """Multi-worker attention scores in the final PyTorch layout:
    out[b, q, key*W + w] = (x Wq_w^T)[b,q] . (y Wk_w^T)[b,key] / sqrt(R)."""
    B, kq, R = x.shape
    WR = wq_fused.shape[1]
    W = WR // R
    cross = y is not None
    kv = y.shape[1] if cross else kq

    # Grid: min(B, 2) "parallel" chunks -> both v7x TensorCores get work while
    # v5e/v6e pay at most two steps of pipeline overhead; projections are batched
    # across each chunk.  Callers can force num_chunks=1 to fully collapse.
    G = num_chunks if num_chunks is not None else min(B, 2)
    if B % G != 0:
        G = 1
    bc = B // G

    expand, mask = _score_constants(W, R, kv)

    kernel = functools.partial(_scores_kernel, cross=cross)

    act_x_spec = pl.BlockSpec((bc, kq, R), lambda g: (g, 0, 0))
    act_y_spec = pl.BlockSpec((bc, kv, R), lambda g: (g, 0, 0))
    const = lambda shape: pl.BlockSpec(shape, lambda g: (0, 0))
    in_specs = ([act_x_spec] + ([act_y_spec] if cross else [])
                + [const((R, WR)), const((WR, R)),
                   const((kv, W * kv)), const((WR, W * kv))])
    args = ((x, y) if cross else (x,)) + (wq_fused, wk_stacked, expand, mask)

    flops = (2 * B * kq * R * WR + 2 * B * kv * R * WR
             + 2 * B * WR * W * kv * (kq + kv))
    bytes_accessed = 4 * (B * kq * R + (B * kv * R if cross else 0)
                          + G * (2 * R * WR + kv * W * kv + WR * W * kv)
                          + B * kq * W * kv)

    # VMEM guard: per-step f32 blocks are double-buffered by the pipeline.
    est_vmem = 4 * 2 * (bc * kq * R + (bc * kv * R if cross else 0)
                        + 2 * R * WR + kv * W * kv + WR * W * kv
                        + bc * kq * W * kv)
    compiler_kwargs = dict(dimension_semantics=("parallel",))
    if est_vmem > 16 * 1024 * 1024:
        try:
            cap = pltpu.get_tpu_info().vmem_capacity_bytes   # 64 MiB v7x, 128 MiB v5e/v6e
        except Exception:
            cap = 64 * 1024 * 1024
        compiler_kwargs["vmem_limit_bytes"] = int(min(2 * est_vmem, (3 * cap) // 4))
    # TODO(synk): when rnn_size scales toward ~2K, tile the W*R weight axis with an
    # "arbitrary" reduction grid axis (VMEM scratch accumulator), cast weights to
    # bf16, and single-buffer the constant-index weight/mask specs
    # (pipeline_mode=pl.Buffered(1)) to stay inside v7x's 64 MiB VMEM.

    return pl.pallas_call(
        kernel,
        out_shape=jax.ShapeDtypeStruct((B, kq, W * kv), jnp.float32),
        grid_spec=pltpu.PrefetchScalarGridSpec(
            num_scalar_prefetch=0,
            grid=(G,),
            in_specs=in_specs,
            out_specs=pl.BlockSpec((bc, kq, W * kv), lambda g: (g, 0, 0)),
        ),
        compiler_params=pltpu.CompilerParams(**compiler_kwargs),
        cost_estimate=pl.CostEstimate(
            flops=flops, transcendentals=0, bytes_accessed=bytes_accessed),
    )(*args)


def _prep_side(wq_stacked, wk_stacked):
    """(W, out, in) nn.Linear stacks -> fused Q (in, W*out) with 1/sqrt(in) folded,
    and stacked K (W*out, in)."""
    W, out_f, in_f = wq_stacked.shape
    inv_norm = jnp.float32(1.0 / math.sqrt(float(in_f)))
    wq_fused = jnp.transpose(wq_stacked, (2, 0, 1)).reshape(in_f, W * out_f) * inv_norm
    wk_stk = wk_stacked.reshape(W * out_f, in_f)
    return wq_fused, wk_stk


def prepare_worker_params(params):
    """One-time weight preparation, hoisted out of the forward pass."""
    wq_sa, wk_sa = _prep_side(params["Wq_SA"], params["Wk_SA"])
    wq_ca, wk_ca = _prep_side(params["Wq_CA"], params["Wk_CA"])
    return {"wq_sa": wq_sa, "wk_sa": wk_sa, "wq_ca": wq_ca, "wk_ca": wk_ca}


def worker_forward(prepared, a, b, s_1, s_2, *, compute_cross_attention=False):
    """Mirrors Worker.forward(a, b, s_1, s_2) in eval mode.

    The original forward computes the cross-attention branch, applies s_1, and
    then discards the result (only `sa` is returned), so that dead branch is
    gated off by default.
    """
    # TODO(synk): nn.Dropout is treated as identity (eval mode).
    if compute_cross_attention:
        # NOTE: the original module's reshape also ties b's sequence length to a's.
        ca = fused_attn_scores(a, prepared["wq_ca"], prepared["wk_ca"], y=b)
        _ = s_1(ca)   # intentionally unused, matching the PyTorch module
    sa = fused_attn_scores(a, prepared["wq_sa"], prepared["wk_sa"])
    return s_2(sa)


# --------------------------------------------------------------------------- #
# Parameter init + pure-JAX reference
# --------------------------------------------------------------------------- #
def init_params(key, rnn_size, workers):
    """Deterministic init matching nn.Linear's uniform(-1/sqrt(in), 1/sqrt(in))."""
    bound = 1.0 / math.sqrt(rnn_size)
    keys = jax.random.split(key, 6)
    shape = (workers, rnn_size, rnn_size)

    def u(k, s):
        return jax.random.uniform(k, s, jnp.float32, minval=-bound, maxval=bound)

    return {
        "Wq_CA": u(keys[0], shape),
        "Wk_CA": u(keys[1], shape),
        "Wq_SA": u(keys[2], shape),
        "Wk_SA": u(keys[3], shape),
        # mixing layers are defined in __init__ but never used in forward
        "mixing_CA": u(keys[4], (1, workers)),
        "mixing_SA": u(keys[5], (1, workers)),
    }


def _reference_scores(x, y, wq, wk):
    """Pure-JAX reference for the per-worker score computation."""
    B, k, R = x.shape
    W = wq.shape[0]
    q = jnp.einsum("bkr,wor->bwko", x, wq)
    kk = jnp.einsum("bkr,wor->bwko", y, wk)
    s = jnp.einsum("bwqo,bwko->bwqk", q, kk) / math.sqrt(float(R))
    return jnp.transpose(s, (0, 2, 3, 1)).reshape(B, k, k * W)


# --------------------------------------------------------------------------- #
# Test harness
# --------------------------------------------------------------------------- #
if __name__ == "__main__":
    batch, seq_k, rnn_size, workers = 2, 8, 32, 4

    key = jax.random.PRNGKey(0)
    k_params, k_a, k_b = jax.random.split(key, 3)
    params = init_params(k_params, rnn_size, workers)
    prepared = prepare_worker_params(params)

    a = jax.random.normal(k_a, (batch, seq_k, rnn_size), jnp.float32)
    b = jax.random.normal(k_b, (batch, seq_k, rnn_size), jnp.float32)

    # s_1 / s_2 are callables passed to forward in the original module
    s_1 = lambda t: jax.nn.softmax(t, axis=-1)
    s_2 = lambda t: jax.nn.softmax(t, axis=-1)

    # --- self-attention (the module's actual output) ------------------------ #
    out = jax.block_until_ready(worker_forward(prepared, a, b, s_1, s_2))
    ref = jax.block_until_ready(
        s_2(_reference_scores(a, a, params["Wq_SA"], params["Wk_SA"])))
    assert out.shape == (batch, seq_k, seq_k * workers), out.shape
    np.testing.assert_allclose(np.asarray(out), np.asarray(ref), rtol=1e-5, atol=1e-5)

    # --- fully collapsed grid (whole batch in a single step) ---------------- #
    sa_1chunk = jax.block_until_ready(
        fused_attn_scores(a, prepared["wq_sa"], prepared["wk_sa"], num_chunks=1))
    np.testing.assert_allclose(np.asarray(s_2(sa_1chunk)), np.asarray(ref),
                               rtol=1e-5, atol=1e-5)

    # --- cross-attention kernel path (dead-by-default branch) --------------- #
    ca = jax.block_until_ready(
        fused_attn_scores(a, prepared["wq_ca"], prepared["wk_ca"], y=b))
    ca_ref = _reference_scores(a, b, params["Wq_CA"], params["Wk_CA"])
    np.testing.assert_allclose(np.asarray(ca), np.asarray(ca_ref), rtol=1e-5, atol=1e-5)

    out_full = jax.block_until_ready(
        worker_forward(prepared, a, b, s_1, s_2, compute_cross_attention=True))
    np.testing.assert_allclose(np.asarray(out_full), np.asarray(out),
                               rtol=1e-6, atol=1e-6)

    print("KERNEL_OK")
</pallas_src>

<mosaic_0001>
module attributes {stable_mosaic.version = 11 : i64} {
  func.func @_scores_kernel(%arg0: i32, %arg1: memref<1x8x32xf32, #tpu.memory_space<vmem>>, %arg2: memref<32x128xf32, #tpu.memory_space<vmem>>, %arg3: memref<128x32xf32, #tpu.memory_space<vmem>>, %arg4: memref<8x32xf32, #tpu.memory_space<vmem>>, %arg5: memref<128x32xf32, #tpu.memory_space<vmem>>, %arg6: memref<1x8x32xf32, #tpu.memory_space<vmem>>) attributes {dimension_semantics = [#tpu.dimension_semantics<parallel>], iteration_bounds = array<i64: 2>, scalar_prefetch = 0 : i64, scratch_operands = 0 : i64, tpu.core_type = #tpu.core_type<tc>, window_params = [{transform_indices = @transform_0, window_bounds = array<i64: 1, 8, 32>}, {pipeline_mode = #tpu.pipeline_mode<synchronous>, transform_indices = @transform_1, window_bounds = array<i64: 32, 128>}, {pipeline_mode = #tpu.pipeline_mode<synchronous>, transform_indices = @transform_2, window_bounds = array<i64: 128, 32>}, {pipeline_mode = #tpu.pipeline_mode<synchronous>, transform_indices = @transform_3, window_bounds = array<i64: 8, 32>}, {pipeline_mode = #tpu.pipeline_mode<synchronous>, transform_indices = @transform_4, window_bounds = array<i64: 128, 32>}, {transform_indices = @transform_5, window_bounds = array<i64: 1, 8, 32>}]} {
    %c0 = arith.constant 0 : index
    %c0_0 = arith.constant 0 : index
    %c0_1 = arith.constant 0 : index
    %0 = vector.load %arg1[%c0, %c0_0, %c0_1] : memref<1x8x32xf32, #tpu.memory_space<vmem>>, vector<1x8x32xf32>
    %1 = vector.shape_cast %0 : vector<1x8x32xf32> to vector<8x32xf32>
    %c0_2 = arith.constant 0 : index
    %c0_3 = arith.constant 0 : index
    %2 = vector.load %arg2[%c0_2, %c0_3] : memref<32x128xf32, #tpu.memory_space<vmem>>, vector<32x128xf32>
    %cst = arith.constant dense<0.000000e+00> : vector<8x128xf32>
    %3 = tpu.matmul %1, %2, %cst {dimension_numbers = #tpu.dot_dimension_numbers<[1], [0], [0], [1], [0, 0, 1, 1], [], []>} : vector<8x32xf32>, vector<32x128xf32>, vector<8x128xf32> -> vector<8x128xf32>
    %c0_4 = arith.constant 0 : index
    %c0_5 = arith.constant 0 : index
    %4 = vector.load %arg3[%c0_4, %c0_5] : memref<128x32xf32, #tpu.memory_space<vmem>>, vector<128x32xf32>
    %cst_6 = arith.constant dense<0.000000e+00> : vector<128x8xf32>
    %5 = tpu.matmul %4, %1, %cst_6 {dimension_numbers = #tpu.dot_dimension_numbers<[1], [1], [0], [0], [0, 0, 1, 0], [], []>} : vector<128x32xf32>, vector<8x32xf32>, vector<128x8xf32> -> vector<128x8xf32>
    %c0_7 = arith.constant 0 : index
    %c0_8 = arith.constant 0 : index
    %6 = vector.load %arg4[%c0_7, %c0_8] : memref<8x32xf32, #tpu.memory_space<vmem>>, vector<8x32xf32>
    %c0_9 = arith.constant 0 : index
    %c0_10 = arith.constant 0 : index
    %7 = vector.load %arg5[%c0_9, %c0_10] : memref<128x32xf32, #tpu.memory_space<vmem>>, vector<128x32xf32>
    %cst_11 = arith.constant dense<0.000000e+00> : vector<128x32xf32>
    %8 = tpu.matmul %5, %6, %cst_11 {dimension_numbers = #tpu.dot_dimension_numbers<[1], [0], [0], [1], [0, 0, 1, 1], [], []>} : vector<128x8xf32>, vector<8x32xf32>, vector<128x32xf32> -> vector<128x32xf32>
    %9 = arith.mulf %8, %7 : vector<128x32xf32>
    %cst_12 = arith.constant dense<0.000000e+00> : vector<8x32xf32>
    %10 = tpu.matmul %3, %9, %cst_12 {dimension_numbers = #tpu.dot_dimension_numbers<[1], [0], [0], [1], [0, 0, 1, 1], [], []>} : vector<8x128xf32>, vector<128x32xf32>, vector<8x32xf32> -> vector<8x32xf32>
    %11 = vector.shape_cast %10 : vector<8x32xf32> to vector<1x8x32xf32>
    %c0_13 = arith.constant 0 : index
    %c0_14 = arith.constant 0 : index
    %c0_15 = arith.constant 0 : index
    %12 = vector.load %arg6[%c0_13, %c0_14, %c0_15] : memref<1x8x32xf32, #tpu.memory_space<vmem>>, vector<1x8x32xf32>
    tpu.vector_store %arg6[%c0_13, %c0_14, %c0_15], %11 {strides = array<i32>} : memref<1x8x32xf32, #tpu.memory_space<vmem>>, vector<1x8x32xf32>,
    return
  }
  func.func @transform_0(%arg0: i32) -> (i32, i32, i32) {
    %c0_i32 = arith.constant 0 : i32
    %c0_i32_0 = arith.constant 0 : i32
    %c0_i32_1 = arith.constant 0 : i32
    return %arg0, %c0_i32, %c0_i32_0 : i32, i32, i32
  }
  func.func @transform_1(%arg0: i32) -> (i32, i32) {
    %c0_i32 = arith.constant 0 : i32
    %c0_i32_0 = arith.constant 0 : i32
    %c0_i32_1 = arith.constant 0 : i32
    return %c0_i32, %c0_i32_0 : i32, i32
  }
  func.func @transform_2(%arg0: i32) -> (i32, i32) {
    %c0_i32 = arith.constant 0 : i32
    %c0_i32_0 = arith.constant 0 : i32
    %c0_i32_1 = arith.constant 0 : i32
    return %c0_i32, %c0_i32_0 : i32, i32
  }
  func.func @transform_3(%arg0: i32) -> (i32, i32) {
    %c0_i32 = arith.constant 0 : i32
    %c0_i32_0 = arith.constant 0 : i32
    %c0_i32_1 = arith.constant 0 : i32
    return %c0_i32, %c0_i32_0 : i32, i32
  }
  func.func @transform_4(%arg0: i32) -> (i32, i32) {
    %c0_i32 = arith.constant 0 : i32
    %c0_i32_0 = arith.constant 0 : i32
    %c0_i32_1 = arith.constant 0 : i32
    return %c0_i32, %c0_i32_0 : i32, i32
  }
  func.func @transform_5(%arg0: i32) -> (i32, i32, i32) {
    %c0_i32 = arith.constant 0 : i32
    %c0_i32_0 = arith.constant 0 : i32
    %c0_i32_1 = arith.constant 0 : i32
    return %arg0, %c0_i32, %c0_i32_0 : i32, i32, i32
  }
}

</mosaic_0001>

<llo_original>
// kernel: tpu_custom_call.1
$region0: #{tpu_custom_call.1}
  #allocation0 [shape = 'u32[]', space=smem, size = 0x4, offset = 0x4, fixed_abs, tag = 'smem constant byte address 0x4 - core index']
  #allocation1 [shape = 'u32[72,128]{1,0:T(1,128)}', space=vmem, size = 0x9000, scoped, tag = 'internal scratch']
  %s0 = inlined_call_operand.vmem [shape: f32[2,8,32], index: 0, kind: input, shape index: {}]
  %s1 = inlined_call_operand.vmem [shape: f32[32,128], index: 1, kind: input, shape index: {}]
  %s2 = inlined_call_operand.vmem [shape: f32[128,32], index: 2, kind: input, shape index: {}]
  %s3 = inlined_call_operand.vmem [shape: f32[8,32], index: 3, kind: input, shape index: {}]
  %s4 = inlined_call_operand.vmem [shape: f32[128,32], index: 4, kind: input, shape index: {}]
  %s5 = inlined_call_operand.hbm [shape: f32[2,8,32], index: 5, kind: output, shape index: {}]
  %s6 = sld [smem:[#allocation0]]
  $region53: #{tpu_custom_call.1} parent=0
    _
  %s8 = ssub.s32 1, %s6
  %s9 = scalar_select 0, %s8, %s6
  $region1: #{tpu_custom_call.1} parent=0
    #allocation2 [shape = 'u8[8192]{0}', space=vmem, size = 0x2000, scoped, tag = 'output window, operand 0']
    #allocation3 [shape = 's32[2]{0}', space=sflag, size = 0x8, scoped, tag = 'scoped memory for tpu_custom_call.1']
    %10 = vsyncpa [#allocation3], 0
    %s11 = scalar_lea.sflag [#allocation3], 1
    %12 = vsyncpa %s11, 0
    loop: start=0, step=1, limit=4
    $region2: #{tpu_custom_call.1} parent=1 // loop_pre_header
      _
    $region3: #{tpu_custom_call.1} parent=1 // loop_header
      %s14 = sphi 0, %s18
      %p15 = scmp.ge.s32.totalorder %s14, 4
      %s24 = sphi 0, %s26
      %s27 = sphi 0, %s24
      %s28 = sphi 0, %s27
      %s44 = sphi 0, %s28
      %s48 = sphi 0, %s48
      %s50 = sphi 0, %s48
      %s51 = sphi 0, %s50
      %s65 = sphi 0, %s51
      %s69 = sphi 0, %s69
      %s71 = sphi 0, %s69
      %s72 = sphi 0, %s71
      %s86 = sphi 0, %s72
      %s90 = sphi 0, %s90
      %s92 = sphi 0, %s90
      %s93 = sphi 0, %s92
      %s107 = sphi 0, %s93
      %s111 = sphi 0, %s111
      %s113 = sphi 0, %s111
      %s114 = sphi 0, %s113
      %s128 = sphi 0, %s114
      %s134 = sphi 0, %s136
      %s137 = sphi 0, %s134
      %s138 = sphi 0, %s137
      %s154 = sphi 0, %s138
    $region4: #{tpu_custom_call.1} parent=1 // loop_header_branch
      %17 = sbr.rel (%p15) target = $region8
    $region5: #{tpu_custom_call.1} parent=1 // loop_body
      %s19 = ssub.s32 %s14, 1
      %s20 = ssub.s32 %s14, 2
      %s21 = sadd.s32 %s14, 1
      %s22 = ssub.s32 %s14, %s21
      %p23 = scmp.eq.s32.totalorder %s22, 0
      %s25 = sadd.s32 %s24, 1
      %s26 = scalar_select %p23, %s24, %s25
      %p29 = pneg %p23
      %p30 = scmp.eq.s32.totalorder %s14, 1
      %p31 = por %p29, %p30
      %p32 = scmp.ne.s32.totalorder %s24, %s27
      %p33 = scmp.eq.s32.totalorder %s14, 0
      %p34 = por %p32, %p33
      %p35 = scmp.ne.s32.totalorder %s24, %s27
      %p36 = scmp.eq.s32.totalorder %s19, 1
      %p37 = por %p35, %p36
      %p38 = scmp.ne.s32.totalorder %s27, %s28
      %p39 = scmp.eq.s32.totalorder %s19, 0
      %p40 = por %p38, %p39
      %p41 = scmp.ne.s32.totalorder %s27, %s28
      %p42 = scmp.eq.s32.totalorder %s20, 1
      %p43 = por %p41, %p42
      %p45 = scmp.ne.s32.totalorder %s28, %s44
      %p46 = scmp.eq.s32.totalorder %s20, 0
      %p47 = por %p45, %p46
      %s49 = sadd.s32 %s48, 1
      %p52 = scmp.eq.s32.totalorder %s14, 1
      %p53 = scmp.ne.s32.totalorder %s48, %s50
      %p54 = scmp.eq.s32.totalorder %s14, 0
      %p55 = por %p53, %p54
      %p56 = scmp.ne.s32.totalorder %s48, %s50
      %p57 = scmp.eq.s32.totalorder %s19, 1
      %p58 = por %p56, %p57
      %p59 = scmp.ne.s32.totalorder %s50, %s51
      %p60 = scmp.eq.s32.totalorder %s19, 0
      %p61 = por %p59, %p60
      %p62 = scmp.ne.s32.totalorder %s50, %s51
      %p63 = scmp.eq.s32.totalorder %s20, 1
      %p64 = por %p62, %p63
      %p66 = scmp.ne.s32.totalorder %s51, %s65
      %p67 = scmp.eq.s32.totalorder %s20, 0
      %p68 = por %p66, %p67
      %s70 = sadd.s32 %s69, 1
      %p73 = scmp.eq.s32.totalorder %s14, 1
      %p74 = scmp.ne.s32.totalorder %s69, %s71
      %p75 = scmp.eq.s32.totalorder %s14, 0
      %p76 = por %p74, %p75
      %p77 = scmp.ne.s32.totalorder %s69, %s71
      %p78 = scmp.eq.s32.totalorder %s19, 1
      %p79 = por %p77, %p78
      %p80 = scmp.ne.s32.totalorder %s71, %s72
      %p81 = scmp.eq.s32.totalorder %s19, 0
      %p82 = por %p80, %p81
      %p83 = scmp.ne.s32.totalorder %s71, %s72
      %p84 = scmp.eq.s32.totalorder %s20, 1
      %p85 = por %p83, %p84
      %p87 = scmp.ne.s32.totalorder %s72, %s86
      %p88 = scmp.eq.s32.totalorder %s20, 0
      %p89 = por %p87, %p88
      %s91 = sadd.s32 %s90, 1
      %p94 = scmp.eq.s32.totalorder %s14, 1
      %p95 = scmp.ne.s32.totalorder %s90, %s92
      %p96 = scmp.eq.s32.totalorder %s14, 0
      %p97 = por %p95, %p96
      %p98 = scmp.ne.s32.totalorder %s90, %s92
      %p99 = scmp.eq.s32.totalorder %s19, 1
      %p100 = por %p98, %p99
      %p101 = scmp.ne.s32.totalorder %s92, %s93
      %p102 = scmp.eq.s32.totalorder %s19, 0
      %p103 = por %p101, %p102
      %p104 = scmp.ne.s32.totalorder %s92, %s93
      %p105 = scmp.eq.s32.totalorder %s20, 1
      %p106 = por %p104, %p105
      %p108 = scmp.ne.s32.totalorder %s93, %s107
      %p109 = scmp.eq.s32.totalorder %s20, 0
      %p110 = por %p108, %p109
      %s112 = sadd.s32 %s111, 1
      %p115 = scmp.eq.s32.totalorder %s14, 1
      %p116 = scmp.ne.s32.totalorder %s111, %s113
      %p117 = scmp.eq.s32.totalorder %s14, 0
      %p118 = por %p116, %p117
      %p119 = scmp.ne.s32.totalorder %s111, %s113
      %p120 = scmp.eq.s32.totalorder %s19, 1
      %p121 = por %p119, %p120
      %p122 = scmp.ne.s32.totalorder %s113, %s114
      %p123 = scmp.eq.s32.totalorder %s19, 0
      %p124 = por %p122, %p123
      %p125 = scmp.ne.s32.totalorder %s113, %s114
      %p126 = scmp.eq.s32.totalorder %s20, 1
      %p127 = por %p125, %p126
      %p129 = scmp.ne.s32.totalorder %s114, %s128
      %p130 = scmp.eq.s32.totalorder %s20, 0
      %p131 = por %p129, %p130
      %s132 = ssub.s32 %s14, %s21
      %p133 = scmp.eq.s32.totalorder %s132, 0
      %s135 = sadd.s32 %s134, 1
      %s136 = scalar_select %p133, %s134, %s135
      %p139 = pneg %p133
      %p140 = scmp.eq.s32.totalorder %s14, 1
      %p141 = por %p139, %p140
      %p142 = scmp.ne.s32.totalorder %s134, %s137
      %p143 = scmp.eq.s32.totalorder %s14, 0
      %p144 = por %p142, %p143
      %p145 = scmp.ne.s32.totalorder %s134, %s137
      %p146 = scmp.eq.s32.totalorder %s19, 1
      %p147 = por %p145, %p146
      %p148 = scmp.ne.s32.totalorder %s137, %s138
      %p149 = scmp.eq.s32.totalorder %s19, 0
      %p150 = por %p148, %p149
      %p151 = scmp.ne.s32.totalorder %s137, %s138
      %p152 = scmp.eq.s32.totalorder %s20, 1
      %p153 = por %p151, %p152
      %p155 = scmp.ne.s32.totalorder %s138, %s154
      %p156 = scmp.eq.s32.totalorder %s20, 0
      %p157 = por %p155, %p156
      %p158 = scmp.le.s32.totalorder 1, %s14
      %p159 = scmp.lt.s32.totalorder %s14, 3
      %p160 = pnand %p158, %p159
      %p161 = pneg %p160
      // Predicated region
      $region9: #{tpu_custom_call.1} parent=5 // pred_check
        _
      $region10: #{tpu_custom_call.1} parent=5 // pred_check_branch
        %163 = sbr.rel (%p160) target = $region12
      $region11: #{tpu_custom_call.1} parent=5 // pred_region
        %s164 = ssub.s32 %s14, 1
        // Predicated region
        $region13: #{tpu_custom_call.1} parent=11 // pred_check
          %p165 = pneg %p61
        $region14: #{tpu_custom_call.1} parent=11 // pred_check_branch
          %167 = sbr.rel (%p165) target = $region16
        $region15: #{tpu_custom_call.1} parent=11 // pred_region
          _
        $region16: #{tpu_custom_call.1} parent=11 // pred_fallthru
          _
        // Predicated region
        $region17: #{tpu_custom_call.1} parent=11 // pred_check
          %p168 = pneg %p82
        $region18: #{tpu_custom_call.1} parent=11 // pred_check_branch
          %170 = sbr.rel (%p168) target = $region20
        $region19: #{tpu_custom_call.1} parent=11 // pred_region
          _
        $region20: #{tpu_custom_call.1} parent=11 // pred_fallthru
          _
        // Predicated region
        $region21: #{tpu_custom_call.1} parent=11 // pred_check
          %p171 = pneg %p103
        $region22: #{tpu_custom_call.1} parent=11 // pred_check_branch
          %173 = sbr.rel (%p171) target = $region24
        $region23: #{tpu_custom_call.1} parent=11 // pred_region
          _
        $region24: #{tpu_custom_call.1} parent=11 // pred_fallthru
          _
        // Predicated region
        $region25: #{tpu_custom_call.1} parent=11 // pred_check
          %p174 = pneg %p124
        $region26: #{tpu_custom_call.1} parent=11 // pred_check_branch
          %176 = sbr.rel (%p174) target = $region28
        $region27: #{tpu_custom_call.1} parent=11 // pred_region
          _
        $region28: #{tpu_custom_call.1} parent=11 // pred_fallthru
          _
      $region12: #{tpu_custom_call.1} parent=5 // pred_fallthru
        _
      %p177 = scmp.lt.s32.totalorder %s14, 2
      // Predicated region
      $region29: #{tpu_custom_call.1} parent=5 // pred_check
        %p178 = pneg %p177
      $region30: #{tpu_custom_call.1} parent=5 // pred_check_branch
        %180 = sbr.rel (%p178) target = $region32
      $region31: #{tpu_custom_call.1} parent=5 // pred_region
        // Predicated region
        $region33: #{tpu_custom_call.1} parent=31 // pred_check
          %p181 = pneg %p34
        $region34: #{tpu_custom_call.1} parent=31 // pred_check_branch
          %183 = sbr.rel (%p181) target = $region36
        $region35: #{tpu_custom_call.1} parent=31 // pred_region
          %p184 = scmp.lt.s32.totalorder %s14, 1
          %s185 = scalar_select %p184, %s14, 1
          %s186 = smul.addr %s185, 8
          %s187 = scalar_lea.vmem %s0, %s186
        $region36: #{tpu_custom_call.1} parent=31 // pred_fallthru
          _
      $region32: #{tpu_custom_call.1} parent=5 // pred_fallthru
        _
      %p188 = scmp.le.s32.totalorder 1, %s14
      %p189 = scmp.lt.s32.totalorder %s14, 3
      %p190 = pnand %p188, %p189
      %p191 = pneg %p190
      // Predicated region
      $region37: #{tpu_custom_call.1} parent=5 // pred_check
        _
      $region38: #{tpu_custom_call.1} parent=5 // pred_check_branch
        %193 = sbr.rel (%p190) target = $region40
      $region39: #{tpu_custom_call.1} parent=5 // pred_region
        %s194 = ssub.s32 %s14, 1
        %p195 = scmp.lt.s32.totalorder %s19, 1
        %s196 = scalar_select %p195, %s19, 1
        %s197 = smul.addr %s196, 8
        %s198 = scalar_lea.vmem %s0, %s197
        %p199 = pneg %p40
        %p200 = pneg %p37
        %p201 = pneg %p61
        %p202 = pneg %p58
        %p203 = pneg %p82
        %p204 = pneg %p79
        %p205 = pneg %p103
        %p206 = pneg %p100
        %p207 = pneg %p124
        %p208 = pneg %p121
        %p209 = pneg %p150
        %p210 = pneg %p147
        %s211 = sand.u32 %s137, 1
        %s212 = scalar_lea.sflag [#allocation3], %s211
        %s213 = sand.u32 %s137, 1
        %s214 = smul.addr %s213, 8
        %s215 = scalar_lea.vmem [#allocation2], %s214
        %p216 = scmp.lt.s32.totalorder %s19, 1
        %s217 = scalar_select %p216, %s19, 1
        %s218 = smul.addr %s217, 8
        %s219 = scalar_lea.vmem %s0, %s218
        %v220 = vld [vmem:[%s219] sm:$0xff]
        %v221 = vld [vmem:[%s1] sm:$0xff]
        %v222 = vld [vmem:[%s1 + $0x8] sm:$0xff]
        %v223 = vld [vmem:[%s1 + $0x10] sm:$0xff]
        %v224 = vld [vmem:[%s1 + $0x18] sm:$0xff]
        %vm225 = vcmask 261120
        %v227 = vsel %vm225, %v220, 0
        %229 = vmatpush.msra.mxu0 0.0
        %230 = vmatpush.msra.mxu0 0.0
        %231 = vmatpush.msra.mxu0 0.0
        %232 = vmatpush.msra.mxu0 0.0
        %233 = vmatpush.msra.mxu0 0.0
        %234 = vmatpush.msra.mxu0 0.0
        %235 = vmatpush.msra.mxu0 0.0
        %236 = vmatpush.msra.mxu0 0.0
        %237 = vmatpush.msra.mxu0 0.0
        %238 = vmatpush.msra.mxu0 0.0
        %239 = vmatpush.msra.mxu0 0.0
        %240 = vmatpush.msra.mxu0 0.0
        %241 = vmatpush.msra.mxu0 %v224
        %242 = vmatpush.msra.mxu0 %v223
        %243 = vmatpush.msra.mxu0 %v222
        %244 = vmatpush.msra.mxu0 %v221
        %245 = vmatmul.f32.gmra.mxu0 %v227
        %v246 = vpop.f32.mrf.mxu0
        %v247 = vadd.f32 0.0, %v246
        %248 = vdwg.mxu0
        %v249 = vld [vmem:[%s2] sm:$0xff]
        %v250 = vld [vmem:[%s2 + $0x8] sm:$0xff]
        %v251 = vld [vmem:[%s2 + $0x10] sm:$0xff]
        %v252 = vld [vmem:[%s2 + $0x18] sm:$0xff]
        %v253 = vld [vmem:[%s2 + $0x20] sm:$0xff]
        %v254 = vld [vmem:[%s2 + $0x28] sm:$0xff]
        %v255 = vld [vmem:[%s2 + $0x30] sm:$0xff]
        %v256 = vld [vmem:[%s2 + $0x38] sm:$0xff]
        %v257 = vld [vmem:[%s2 + $0x40] sm:$0xff]
        %v258 = vld [vmem:[%s2 + $0x48] sm:$0xff]
        %v259 = vld [vmem:[%s2 + $0x50] sm:$0xff]
        %v260 = vld [vmem:[%s2 + $0x58] sm:$0xff]
        %v261 = vld [vmem:[%s2 + $0x60] sm:$0xff]
        %v262 = vld [vmem:[%s2 + $0x68] sm:$0xff]
        %v263 = vld [vmem:[%s2 + $0x70] sm:$0xff]
        %v264 = vld [vmem:[%s2 + $0x78] sm:$0xff]
        %v266 = vsel %vm225, %v249, 0
        %v269 = vsel %vm225, %v250, 0
        %v272 = vsel %vm225, %v251, 0
        %v275 = vsel %vm225, %v252, 0
        %v278 = vsel %vm225, %v253, 0
        %v281 = vsel %vm225, %v254, 0
        %v284 = vsel %vm225, %v255, 0
        %v287 = vsel %vm225, %v256, 0
        %v290 = vsel %vm225, %v257, 0
        %v293 = vsel %vm225, %v258, 0
        %v296 = vsel %vm225, %v259, 0
        %v299 = vsel %vm225, %v260, 0
        %v302 = vsel %vm225, %v261, 0
        %v305 = vsel %vm225, %v262, 0
        %v308 = vsel %vm225, %v263, 0
        %v311 = vsel %vm225, %v264, 0
        %313 = vmatpush.xpose.msra.mxu0 0.0
        %314 = vmatpush.xpose.msra.mxu0 0.0
        %315 = vmatpush.xpose.msra.mxu0 0.0
        %316 = vmatpush.xpose.msra.mxu0 0.0
        %317 = vmatpush.xpose.msra.mxu0 0.0
        %318 = vmatpush.xpose.msra.mxu0 0.0
        %319 = vmatpush.xpose.msra.mxu0 0.0
        %320 = vmatpush.xpose.msra.mxu0 0.0
        %321 = vmatpush.xpose.msra.mxu0 0.0
        %322 = vmatpush.xpose.msra.mxu0 0.0
        %323 = vmatpush.xpose.msra.mxu0 0.0
        %324 = vmatpush.xpose.msra.mxu0 0.0
        %325 = vmatpush.xpose.msra.mxu0 0.0
        %326 = vmatpush.xpose.msra.mxu0 0.0
        %327 = vmatpush.xpose.msra.mxu0 0.0
        %328 = vmatpush.xpose.msra.mxu0 %v227
        %329 = vmatmul.f32.gmra.mxu0 %v266
        %v330 = vpop.f32.mrf.mxu0
        %v331 = vadd.f32 0.0, %v330
        %332 = vmatmul.f32.gmra.mxu0 %v269
        %v333 = vpop.f32.mrf.mxu0
        %v334 = vadd.f32 0.0, %v333
        %335 = vmatmul.f32.gmra.mxu0 %v272
        %v336 = vpop.f32.mrf.mxu0
        %v337 = vadd.f32 0.0, %v336
        %338 = vmatmul.f32.gmra.mxu0 %v275
        %v339 = vpop.f32.mrf.mxu0
        %v340 = vadd.f32 0.0, %v339
        %341 = vmatmul.f32.gmra.mxu0 %v278
        %v342 = vpop.f32.mrf.mxu0
        %v343 = vadd.f32 0.0, %v342
        %344 = vmatmul.f32.gmra.mxu0 %v281
        %v345 = vpop.f32.mrf.mxu0
        %v346 = vadd.f32 0.0, %v345
        %347 = vmatmul.f32.gmra.mxu0 %v284
        %v348 = vpop.f32.mrf.mxu0
        %v349 = vadd.f32 0.0, %v348
        %350 = vmatmul.f32.gmra.mxu0 %v287
        %v351 = vpop.f32.mrf.mxu0
        %v352 = vadd.f32 0.0, %v351
        %353 = vmatmul.f32.gmra.mxu0 %v290
        %v354 = vpop.f32.mrf.mxu0
        %v355 = vadd.f32 0.0, %v354
        %356 = vmatmul.f32.gmra.mxu0 %v293
        %v357 = vpop.f32.mrf.mxu0
        %v358 = vadd.f32 0.0, %v357
        %359 = vmatmul.f32.gmra.mxu0 %v296
        %v360 = vpop.f32.mrf.mxu0
        %v361 = vadd.f32 0.0, %v360
        %362 = vmatmul.f32.gmra.mxu0 %v299
        %v363 = vpop.f32.mrf.mxu0
        %v364 = vadd.f32 0.0, %v363
        %365 = vmatmul.f32.gmra.mxu0 %v302
        %v366 = vpop.f32.mrf.mxu0
        %v367 = vadd.f32 0.0, %v366
        %368 = vmatmul.f32.gmra.mxu0 %v305
        %v369 = vpop.f32.mrf.mxu0
        %v370 = vadd.f32 0.0, %v369
        %371 = vmatmul.f32.gmra.mxu0 %v308
        %v372 = vpop.f32.mrf.mxu0
        %v373 = vadd.f32 0.0, %v372
        %374 = vmatmul.f32.gmra.mxu0 %v311
        %v375 = vpop.f32.mrf.mxu0
        %v376 = vadd.f32 0.0, %v375
        %377 = vdwg.mxu0
        %v378 = vld [vmem:[%s3] sm:$0xff]
        %v379 = vld [vmem:[%s4] sm:$0xff]
        %v380 = vld [vmem:[%s4 + $0x8] sm:$0xff]
        %v381 = vld [vmem:[%s4 + $0x10] sm:$0xff]
        %v382 = vld [vmem:[%s4 + $0x18] sm:$0xff]
        %v383 = vld [vmem:[%s4 + $0x20] sm:$0xff]
        %v384 = vld [vmem:[%s4 + $0x28] sm:$0xff]
        %v385 = vld [vmem:[%s4 + $0x30] sm:$0xff]
        %v386 = vld [vmem:[%s4 + $0x38] sm:$0xff]
        %v387 = vld [vmem:[%s4 + $0x40] sm:$0xff]
        %v388 = vld [vmem:[%s4 + $0x48] sm:$0xff]
        %v389 = vld [vmem:[%s4 + $0x50] sm:$0xff]
        %v390 = vld [vmem:[%s4 + $0x58] sm:$0xff]
        %v391 = vld [vmem:[%s4 + $0x60] sm:$0xff]
        %v392 = vld [vmem:[%s4 + $0x68] sm:$0xff]
        %v393 = vld [vmem:[%s4 + $0x70] sm:$0xff]
        %v394 = vld [vmem:[%s4 + $0x78] sm:$0xff]
        %vm395 = vcmask 64512
        %v397 = vsel %vm395, %v331, 0
        %v400 = vsel %vm395, %v334, 0
        %v403 = vsel %vm395, %v337, 0
        %v406 = vsel %vm395, %v340, 0
        %v409 = vsel %vm395, %v343, 0
        %v412 = vsel %vm395, %v346, 0
        %v415 = vsel %vm395, %v349, 0
        %v418 = vsel %vm395, %v352, 0
        %v421 = vsel %vm395, %v355, 0
        %v424 = vsel %vm395, %v358, 0
        %v427 = vsel %vm395, %v361, 0
        %v430 = vsel %vm395, %v364, 0
        %v433 = vsel %vm395, %v367, 0
        %v436 = vsel %vm395, %v370, 0
        %v439 = vsel %vm395, %v373, 0
        %v442 = vsel %vm395, %v376, 0
        %444 = vmatpush.msra.mxu0 0.0
        %445 = vmatpush.msra.mxu0 0.0
        %446 = vmatpush.msra.mxu0 0.0
        %447 = vmatpush.msra.mxu0 0.0
        %448 = vmatpush.msra.mxu0 0.0
        %449 = vmatpush.msra.mxu0 0.0
        %450 = vmatpush.msra.mxu0 0.0
        %451 = vmatpush.msra.mxu0 0.0
        %452 = vmatpush.msra.mxu0 0.0
        %453 = vmatpush.msra.mxu0 0.0
        %454 = vmatpush.msra.mxu0 0.0
        %455 = vmatpush.msra.mxu0 0.0
        %456 = vmatpush.msra.mxu0 0.0
        %457 = vmatpush.msra.mxu0 0.0
        %458 = vmatpush.msra.mxu0 0.0
        %459 = vmatpush.msra.mxu0 %v378
        %460 = vmatmul.f32.gmra.mxu0 %v397
        %v461 = vpop.f32.mrf.mxu0
        %v462 = vadd.f32 0.0, %v461
        %463 = vmatmul.f32.gmra.mxu0 %v400
        %v464 = vpop.f32.mrf.mxu0
        %v465 = vadd.f32 0.0, %v464
        %466 = vmatmul.f32.gmra.mxu0 %v403
        %v467 = vpop.f32.mrf.mxu0
        %v468 = vadd.f32 0.0, %v467
        %469 = vmatmul.f32.gmra.mxu0 %v406
        %v470 = vpop.f32.mrf.mxu0
        %v471 = vadd.f32 0.0, %v470
        %472 = vmatmul.f32.gmra.mxu0 %v409
        %v473 = vpop.f32.mrf.mxu0
        %v474 = vadd.f32 0.0, %v473
        %475 = vmatmul.f32.gmra.mxu0 %v412
        %v476 = vpop.f32.mrf.mxu0
        %v477 = vadd.f32 0.0, %v476
        %478 = vmatmul.f32.gmra.mxu0 %v415
        %v479 = vpop.f32.mrf.mxu0
        %v480 = vadd.f32 0.0, %v479
        %481 = vmatmul.f32.gmra.mxu0 %v418
        %v482 = vpop.f32.mrf.mxu0
        %v483 = vadd.f32 0.0, %v482
        %484 = vmatmul.f32.gmra.mxu0 %v421
        %v485 = vpop.f32.mrf.mxu0
        %v486 = vadd.f32 0.0, %v485
        %487 = vmatmul.f32.gmra.mxu0 %v424
        %v488 = vpop.f32.mrf.mxu0
        %v489 = vadd.f32 0.0, %v488
        %490 = vmatmul.f32.gmra.mxu0 %v427
        %v491 = vpop.f32.mrf.mxu0
        %v492 = vadd.f32 0.0, %v491
        %493 = vmatmul.f32.gmra.mxu0 %v430
        %v494 = vpop.f32.mrf.mxu0
        %v495 = vadd.f32 0.0, %v494
        %496 = vmatmul.f32.gmra.mxu0 %v433
        %v497 = vpop.f32.mrf.mxu0
        %v498 = vadd.f32 0.0, %v497
        %499 = vmatmul.f32.gmra.mxu0 %v436
        %v500 = vpop.f32.mrf.mxu0
        %v501 = vadd.f32 0.0, %v500
        %502 = vmatmul.f32.gmra.mxu0 %v439
        %v503 = vpop.f32.mrf.mxu0
        %v504 = vadd.f32 0.0, %v503
        %505 = vmatmul.f32.gmra.mxu0 %v442
        %v506 = vpop.f32.mrf.mxu0
        %v507 = vadd.f32 0.0, %v506
        %508 = vdwg.mxu0
        %v509 = vmul.f32 %v462, %v379
        %v510 = vmul.f32 %v465, %v380
        %v511 = vmul.f32 %v468, %v381
        %v512 = vmul.f32 %v471, %v382
        %v513 = vmul.f32 %v474, %v383
        %v514 = vmul.f32 %v477, %v384
        %v515 = vmul.f32 %v480, %v385
        %v516 = vmul.f32 %v483, %v386
        %v517 = vmul.f32 %v486, %v387
        %v518 = vmul.f32 %v489, %v388
        %v519 = vmul.f32 %v492, %v389
        %v520 = vmul.f32 %v495, %v390
        %v521 = vmul.f32 %v498, %v391
        %v522 = vmul.f32 %v501, %v392
        %v523 = vmul.f32 %v504, %v393
        %v524 = vmul.f32 %v507, %v394
        %525 = vmatpush.msra.mxu0 %v524
        %526 = vmatpush.msra.mxu0 %v523
        %527 = vmatpush.msra.mxu0 %v522
        %528 = vmatpush.msra.mxu0 %v521
        %529 = vmatpush.msra.mxu0 %v520
        %530 = vmatpush.msra.mxu0 %v519
        %531 = vmatpush.msra.mxu0 %v518
        %532 = vmatpush.msra.mxu0 %v517
        %533 = vmatpush.msra.mxu0 %v516
        %534 = vmatpush.msra.mxu0 %v515
        %535 = vmatpush.msra.mxu0 %v514
        %536 = vmatpush.msra.mxu0 %v513
        %537 = vmatpush.msra.mxu0 %v512
        %538 = vmatpush.msra.mxu0 %v511
        %539 = vmatpush.msra.mxu0 %v510
        %540 = vmatpush.msra.mxu0 %v509
        %541 = vmatmul.f32.gmra.mxu0 %v247
        %v542 = vpop.f32.mrf.mxu0
        %v543 = vadd.f32 0.0, %v542
        %544 = vdwg.mxu0
        %545 = vst.msk [vmem:[%s215] sm:$0xff] %vm225, %v543
        %s546 = sand.u32 %s137, 1
        %s547 = scalar_lea.sflag [#allocation3], %s546
        %s548 = sand.u32 %s137, 1
        %s549 = smul.addr %s548, 8
        %s550 = scalar_lea.vmem [#allocation2], %s549
        // Predicated region
        $region41: #{tpu_custom_call.1} parent=39 // pred_check
          %p551 = pneg %p147
        $region42: #{tpu_custom_call.1} parent=39 // pred_check_branch
          %553 = sbr.rel (%p551) target = $region44
        $region43: #{tpu_custom_call.1} parent=39 // pred_region
          %555 = vsyncadd %s547, 0
          %s556 = smul.addr %s19, 8
          %s557 = scalar_lea.hbm %s5, %s556
          %s559 = sshll.u32 %s550, 4
          %s560 = int_to_ptr.vmem [resolvable:$true] %s559
          %s561 = sshll.u32 %s557, 4
          %s562 = int_to_ptr.hbm [resolvable:$true] %s561
          %564 = dma.vmem_to_hbm [thread:$0]  %s560, 128, %s562, %s547
        $region44: #{tpu_custom_call.1} parent=39 // pred_fallthru
          _
      $region40: #{tpu_custom_call.1} parent=5 // pred_fallthru
        _
      %p565 = scmp.le.s32.totalorder 2, %s14
      // Predicated region
      $region45: #{tpu_custom_call.1} parent=5 // pred_check
        %p566 = pneg %p565
      $region46: #{tpu_custom_call.1} parent=5 // pred_check_branch
        %568 = sbr.rel (%p566) target = $region48
      $region47: #{tpu_custom_call.1} parent=5 // pred_region
        %s569 = ssub.s32 %s14, 2
        // Predicated region
        $region49: #{tpu_custom_call.1} parent=47 // pred_check
          %p570 = pneg %p153
        $region50: #{tpu_custom_call.1} parent=47 // pred_check_branch
          %572 = sbr.rel (%p570) target = $region52
        $region51: #{tpu_custom_call.1} parent=47 // pred_region
          %s573 = sand.u32 %s138, 1
          %s574 = scalar_lea.sflag [#allocation3], %s573
          %s575 = sand.u32 %s138, 1
          %s576 = smul.addr %s575, 8
          %s577 = scalar_lea.vmem [#allocation2], %s576
          %579 = dma.done %s574, 128
        $region52: #{tpu_custom_call.1} parent=47 // pred_fallthru
          _
      $region48: #{tpu_custom_call.1} parent=5 // pred_fallthru
        _
    $region6: #{tpu_custom_call.1} parent=1 // loop_footer
      %s18 = sadd.s32 1, %s14
    $region7: #{tpu_custom_call.1} parent=1 // loop_footer_branch
      %13 = sbr.rel target = $region3
    $region8: #{tpu_custom_call.1} parent=1 // loop_exit
      _
    %580 = vsyncpa [#allocation3], 1
    %s581 = scalar_lea.sflag [#allocation3], 1
    %582 = vsyncpa %s581, 1

</llo_original>
